<compile_context>
chip_gen: v7x
topology: tpu7x:2x2x1
jax: 0.10.0
libtpu: 0.0.40
codegen_flags: <defaults>
</compile_context>

<pallas_src>
import functools

import jax
import jax.numpy as jnp
from jax import lax
from jax.experimental import pallas as pl
from jax.experimental.pallas import tpu as pltpu


def _rowsum_to_8(x, tile_rows):
    """(C, tile_rows, 128) -> (C, 8, 128) via a static tree of vreg-aligned adds."""
    parts = [x[:, g * 8:(g + 1) * 8, :] for g in range(tile_rows // 8)]
    while len(parts) > 1:
        nxt = [parts[i] + parts[i + 1] for i in range(0, len(parts) - 1, 2)]
        if len(parts) % 2:
            nxt.append(parts[-1])
        parts = nxt
    return parts[0]


def _dice_partial_kernel(p_ref, t_ref, num_ref, den_ref, *,
                         tile_rows, s_total, padded):
    # p_ref / t_ref : (C, tile_rows, 128) input tiles, native dtype
    # num_ref/den_ref: (C, 8, 128) f32 output blocks, VMEM-resident across the S axis
    s_pid = pl.program_id(1)

    @pl.when(s_pid == 0)
    def _init():
        num_ref[...] = jnp.zeros_like(num_ref)
        den_ref[...] = jnp.zeros_like(den_ref)

    p = p_ref[...].astype(jnp.float32)
    t = t_ref[...].astype(jnp.float32)

    # Numerically-stable softmax over the class axis (axis=0).  C is a major dim, so
    # these reductions / broadcasts are elementwise across C vreg-sets (VPU only).
    m = jnp.max(p, axis=0, keepdims=True)                        # (1, TR, 128)
    e = jnp.exp(p - m)
    inv = pl.reciprocal(jnp.sum(e, axis=0, keepdims=True), approx=False)
    sm = e * inv                                                 # (C, TR, 128)

    def accumulate(mask):
        prod = sm * t              # target is zero on padded columns -> no mask needed
        sq = sm * sm + t * t
        if mask is not None:
            sq = sq * mask         # kill softmax(0)=1/C contribution of padded columns
        num_ref[...] += _rowsum_to_8(prod, tile_rows)
        den_ref[...] += _rowsum_to_8(sq, tile_rows)

    if padded:
        last = pl.num_programs(1) - 1

        @pl.when(s_pid != last)    # unmasked fast path for all full tiles
        def _bulk():
            accumulate(None)

        @pl.when(s_pid == last)    # masked path only on the final tile
        def _tail():
            row = lax.broadcasted_iota(jnp.int32, (tile_rows, 128), 0)
            lane = lax.broadcasted_iota(jnp.int32, (tile_rows, 128), 1)
            idx = (s_pid * tile_rows + row) * 128 + lane         # global spatial index
            mask = (idx < s_total).astype(jnp.float32)[None]     # (1, TR, 128)
            accumulate(mask)
    else:
        accumulate(None)


def dice_loss(predict, target, *, smooth=1.0, ignore_index=0, weight=None,
              input_vmem_budget=16 * 1024 * 1024, max_rows_per_tile=1024):
    """Pallas TPU implementation of DiceLoss.forward (softmax + per-class dice)."""
    predict = jnp.asarray(predict)
    target = jnp.asarray(target)
    assert predict.shape == target.shape, "predict & target shape do not match"
    N, C = predict.shape[0], predict.shape[1]
    S = 1
    for d in predict.shape[2:]:
        S *= int(d)

    # --- tile sizing: rows of 128 lanes; TR rows per grid step, from a VMEM budget ---
    r_raw = -(-S // 128)                           # number of 128-lane rows needed
    p_item = predict.dtype.itemsize
    t_item = target.dtype.itemsize
    max_rows_per_tile = max(8, (int(max_rows_per_tile) // 8) * 8)
    tr = int(input_vmem_budget) // (2 * C * 128 * (p_item + t_item))  # 2 pipeline bufs
    tr = max(8, min((tr // 8) * 8, max_rows_per_tile))
    if tr >= r_raw:
        tr = ((r_raw + 7) // 8) * 8
        n_s = 1
    else:
        n_s = (r_raw + tr - 1) // tr
    s_pad = n_s * tr * 128
    padded = (s_pad != S)

    # --- relayout: (N, C, S) -> (N, C, n_s*TR, 128); stream native dtype (no up-cast) ---
    p = predict.reshape(N, C, S)
    t = target.reshape(N, C, S)
    if padded:
        p = jnp.pad(p, ((0, 0), (0, 0), (0, s_pad - S)))
        t = jnp.pad(t, ((0, 0), (0, 0), (0, s_pad - S)))
    p = p.reshape(N, C, n_s * tr, 128)
    t = t.reshape(N, C, n_s * tr, 128)

    kernel = functools.partial(_dice_partial_kernel,
                               tile_rows=tr, s_total=S, padded=padded)

    out_block = C * 8 * 128 * 4
    in_blocks = C * tr * 128 * (p_item + t_item)
    vmem_limit = int(min(max(2 * in_blocks + 4 * out_block + (8 << 20), 32 << 20),
                         96 << 20))
    cost = pl.CostEstimate(
        flops=int(10 * N * C * s_pad),
        transcendentals=int(N * C * s_pad),
        bytes_accessed=int(p.size * p_item + t.size * t_item + 2 * N * out_block))

    num_part, den_part = pl.pallas_call(
        kernel,
        out_shape=(jax.ShapeDtypeStruct((N, C, 8, 128), jnp.float32),
                   jax.ShapeDtypeStruct((N, C, 8, 128), jnp.float32)),
        grid_spec=pltpu.PrefetchScalarGridSpec(
            num_scalar_prefetch=0,
            grid=(N, n_s),
            in_specs=[
                pl.BlockSpec((None, C, tr, 128), lambda n, s: (n, 0, s, 0)),
                pl.BlockSpec((None, C, tr, 128), lambda n, s: (n, 0, s, 0)),
            ],
            out_specs=(
                pl.BlockSpec((None, C, 8, 128), lambda n, s: (n, 0, 0, 0)),
                pl.BlockSpec((None, C, 8, 128), lambda n, s: (n, 0, 0, 0)),
            ),
        ),
        compiler_params=pltpu.CompilerParams(
            dimension_semantics=("parallel", "arbitrary"),
            vmem_limit_bytes=vmem_limit,
        ),
        cost_estimate=cost,
    )(p, t)

    # --- tiny epilogue in plain JAX: per-(n,c) dice, batch mean, masked class mean ---
    num = jnp.sum(num_part, axis=(2, 3)) + smooth          # (N, C)
    den = jnp.sum(den_part, axis=(2, 3)) + smooth
    loss_nc = 1.0 - num / den
    per_class = jnp.mean(loss_nc, axis=0)                  # (C,)
    if weight is not None:
        per_class = per_class * jnp.asarray(weight, jnp.float32)
    valid = (jnp.arange(C) != ignore_index).astype(jnp.float32)
    total = jnp.sum(per_class * valid)
    n_valid = jnp.maximum(jnp.sum(valid), 1.0)
    return total / n_valid


def dice_loss_ref(predict, target, *, smooth=1.0, ignore_index=0, weight=None):
    """Pure-JAX reference matching the PyTorch module semantics."""
    N, C = predict.shape[0], predict.shape[1]
    p = jax.nn.softmax(predict.reshape(N, C, -1).astype(jnp.float32), axis=1)
    t = target.reshape(N, C, -1).astype(jnp.float32)
    num = jnp.sum(p * t, axis=2) + smooth
    den = jnp.sum(p * p + t * t, axis=2) + smooth
    per_class = jnp.mean(1.0 - num / den, axis=0)          # (C,)
    total = 0.0
    n_valid = 0
    for i in range(C):
        if i != ignore_index:
            li = per_class[i]
            if weight is not None:
                li = li * float(weight[i])
            total = total + li
            n_valid += 1
    return total / max(n_valid, 1)


if __name__ == "__main__":
    key = jax.random.PRNGKey(0)
    k1, k2, k3, k4 = jax.random.split(key, 4)

    # Case 1: small NCHW problem -> single S tile (S=256 padded to one 8x128 tile).
    N, C, H, W = 2, 4, 16, 16
    predict = jax.random.normal(k1, (N, C, H, W), dtype=jnp.float32)   # logits, NCHW
    labels = jax.random.randint(k2, (N, H, W), 0, C)
    target = jnp.transpose(jax.nn.one_hot(labels, C, dtype=jnp.float32), (0, 3, 1, 2))

    out = jax.block_until_ready(dice_loss(predict, target))
    ref = dice_loss_ref(predict, target)
    assert jnp.allclose(out, ref, rtol=1e-5, atol=1e-5), (out, ref)

    # Case 2: multiple S tiles + remainder (masked tail tile) + class weights.
    N2, C2, H2, W2 = 2, 4, 40, 40         # S = 1600 -> 13 rows of 128 -> 2 tiles of 8
    p2 = jax.random.normal(k3, (N2, C2, H2, W2), dtype=jnp.float32)
    l2 = jax.random.randint(k4, (N2, H2, W2), 0, C2)
    t2 = jnp.transpose(jax.nn.one_hot(l2, C2, dtype=jnp.float32), (0, 3, 1, 2))
    w2 = jnp.array([0.5, 1.0, 2.0, 1.5], dtype=jnp.float32)

    out2 = jax.block_until_ready(dice_loss(p2, t2, weight=w2, max_rows_per_tile=8))
    ref2 = dice_loss_ref(p2, t2, weight=w2)
    assert jnp.allclose(out2, ref2, rtol=1e-5, atol=1e-5), (out2, ref2)

    print("KERNEL_OK")
</pallas_src>

<mosaic_0001>
module attributes {stable_mosaic.version = 11 : i64} {
  func.func @_dice_partial_kernel(%arg0: i32, %arg1: i32, %arg2: memref<1x4x8x128xf32, #tpu.memory_space<vmem>>, %arg3: memref<1x4x8x128xf32, #tpu.memory_space<vmem>>, %arg4: memref<1x4x8x128xf32, #tpu.memory_space<vmem>>, %arg5: memref<1x4x8x128xf32, #tpu.memory_space<vmem>>) attributes {dimension_semantics = [#tpu.dimension_semantics<parallel>, #tpu.dimension_semantics<arbitrary>], iteration_bounds = array<i64: 2, 1>, scalar_prefetch = 0 : i64, scratch_operands = 0 : i64, tpu.core_type = #tpu.core_type<tc>, window_params = [{transform_indices = @transform_0, window_bounds = array<i64: 1, 4, 8, 128>}, {transform_indices = @transform_1, window_bounds = array<i64: 1, 4, 8, 128>}, {transform_indices = @transform_2, window_bounds = array<i64: 1, 4, 8, 128>}, {transform_indices = @transform_3, window_bounds = array<i64: 1, 4, 8, 128>}]} {
    %c0_i32 = arith.constant 0 : i32
    %0 = arith.cmpi eq, %arg1, %c0_i32 : i32
    %1 = arith.extui %0 : i1 to i32
    %c0_i32_0 = arith.constant 0 : i32
    %2 = arith.cmpi ne, %1, %c0_i32_0 : i32
    scf.if %2 {
      %cst_13 = arith.constant 0.000000e+00 : f32
      %23 = vector.broadcast %cst_13 : f32 to vector<4x8x128xf32>
      %c0_14 = arith.constant 0 : index
      %c0_15 = arith.constant 0 : index
      %c0_16 = arith.constant 0 : index
      %c0_17 = arith.constant 0 : index
      %24 = vector.load %arg4[%c0_14, %c0_15, %c0_16, %c0_17] : memref<1x4x8x128xf32, #tpu.memory_space<vmem>>, vector<1x4x8x128xf32>
      %25 = vector.shape_cast %24 : vector<1x4x8x128xf32> to vector<4x8x128xf32>
      %26 = vector.shape_cast %23 : vector<4x8x128xf32> to vector<1x4x8x128xf32>
      tpu.vector_store %arg4[%c0_14, %c0_15, %c0_16, %c0_17], %26 {strides = array<i32>} : memref<1x4x8x128xf32, #tpu.memory_space<vmem>>, vector<1x4x8x128xf32>,
      %cst_18 = arith.constant 0.000000e+00 : f32
      %27 = vector.broadcast %cst_18 : f32 to vector<4x8x128xf32>
      %c0_19 = arith.constant 0 : index
      %c0_20 = arith.constant 0 : index
      %c0_21 = arith.constant 0 : index
      %c0_22 = arith.constant 0 : index
      %28 = vector.load %arg5[%c0_19, %c0_20, %c0_21, %c0_22] : memref<1x4x8x128xf32, #tpu.memory_space<vmem>>, vector<1x4x8x128xf32>
      %29 = vector.shape_cast %28 : vector<1x4x8x128xf32> to vector<4x8x128xf32>
      %30 = vector.shape_cast %27 : vector<4x8x128xf32> to vector<1x4x8x128xf32>
      tpu.vector_store %arg5[%c0_19, %c0_20, %c0_21, %c0_22], %30 {strides = array<i32>} : memref<1x4x8x128xf32, #tpu.memory_space<vmem>>, vector<1x4x8x128xf32>,
    } else {
    }
    %c0 = arith.constant 0 : index
    %c0_1 = arith.constant 0 : index
    %c0_2 = arith.constant 0 : index
    %c0_3 = arith.constant 0 : index
    %3 = vector.load %arg2[%c0, %c0_1, %c0_2, %c0_3] : memref<1x4x8x128xf32, #tpu.memory_space<vmem>>, vector<1x4x8x128xf32>
    %4 = vector.shape_cast %3 : vector<1x4x8x128xf32> to vector<4x8x128xf32>
    %c0_4 = arith.constant 0 : index
    %c0_5 = arith.constant 0 : index
    %c0_6 = arith.constant 0 : index
    %c0_7 = arith.constant 0 : index
    %5 = vector.load %arg3[%c0_4, %c0_5, %c0_6, %c0_7] : memref<1x4x8x128xf32, #tpu.memory_space<vmem>>, vector<1x4x8x128xf32>
    %6 = vector.shape_cast %5 : vector<1x4x8x128xf32> to vector<4x8x128xf32>
    %cst = arith.constant dense<0xFF800000> : vector<8x128xf32>
    %7 = vector.multi_reduction <maximumf>, %4, %cst [0] : vector<4x8x128xf32> to vector<8x128xf32>
    %8 = vector.shape_cast %7 : vector<8x128xf32> to vector<1x8x128xf32>
    %9 = vector.broadcast %8 : vector<1x8x128xf32> to vector<4x8x128xf32>
    %10 = arith.subf %4, %9 : vector<4x8x128xf32>
    %11 = math.exp %10 : vector<4x8x128xf32>
    %cst_8 = arith.constant dense<0.000000e+00> : vector<8x128xf32>
    %12 = vector.multi_reduction <add>, %11, %cst_8 [0] : vector<4x8x128xf32> to vector<8x128xf32>
    %13 = vector.shape_cast %12 : vector<8x128xf32> to vector<1x8x128xf32>
    %14 = tpu.reciprocal %13 : vector<1x8x128xf32> -> vector<1x8x128xf32>
    %15 = vector.broadcast %14 : vector<1x8x128xf32> to vector<4x8x128xf32>
    %16 = arith.mulf %11, %15 : vector<4x8x128xf32>
    %c0_i32_9 = arith.constant 0 : i32
    %17 = arith.cmpi ne, %arg1, %c0_i32_9 : i32
    %18 = arith.extui %17 : i1 to i32
    %c0_i32_10 = arith.constant 0 : i32
    %19 = arith.cmpi ne, %18, %c0_i32_10 : i32
    scf.if %19 {
      %23 = arith.mulf %16, %6 : vector<4x8x128xf32>
      %24 = arith.mulf %16, %16 : vector<4x8x128xf32>
      %25 = arith.mulf %6, %6 : vector<4x8x128xf32>
      %26 = arith.addf %24, %25 : vector<4x8x128xf32>
      %c0_13 = arith.constant 0 : index
      %c0_14 = arith.constant 0 : index
      %c0_15 = arith.constant 0 : index
      %c0_16 = arith.constant 0 : index
      %27 = vector.load %arg4[%c0_13, %c0_14, %c0_15, %c0_16] : memref<1x4x8x128xf32, #tpu.memory_space<vmem>>, vector<1x4x8x128xf32>
      %28 = vector.shape_cast %27 : vector<1x4x8x128xf32> to vector<4x8x128xf32>
      %29 = arith.addf %28, %23 : vector<4x8x128xf32>
      %c0_17 = arith.constant 0 : index
      %c0_18 = arith.constant 0 : index
      %c0_19 = arith.constant 0 : index
      %c0_20 = arith.constant 0 : index
      %30 = vector.load %arg4[%c0_17, %c0_18, %c0_19, %c0_20] : memref<1x4x8x128xf32, #tpu.memory_space<vmem>>, vector<1x4x8x128xf32>
      %31 = vector.shape_cast %30 : vector<1x4x8x128xf32> to vector<4x8x128xf32>
      %32 = vector.shape_cast %29 : vector<4x8x128xf32> to vector<1x4x8x128xf32>
      tpu.vector_store %arg4[%c0_17, %c0_18, %c0_19, %c0_20], %32 {strides = array<i32>} : memref<1x4x8x128xf32, #tpu.memory_space<vmem>>, vector<1x4x8x128xf32>,
      %c0_21 = arith.constant 0 : index
      %c0_22 = arith.constant 0 : index
      %c0_23 = arith.constant 0 : index
      %c0_24 = arith.constant 0 : index
      %33 = vector.load %arg5[%c0_21, %c0_22, %c0_23, %c0_24] : memref<1x4x8x128xf32, #tpu.memory_space<vmem>>, vector<1x4x8x128xf32>
      %34 = vector.shape_cast %33 : vector<1x4x8x128xf32> to vector<4x8x128xf32>
      %35 = arith.addf %34, %26 : vector<4x8x128xf32>
      %c0_25 = arith.constant 0 : index
      %c0_26 = arith.constant 0 : index
      %c0_27 = arith.constant 0 : index
      %c0_28 = arith.constant 0 : index
      %36 = vector.load %arg5[%c0_25, %c0_26, %c0_27, %c0_28] : memref<1x4x8x128xf32, #tpu.memory_space<vmem>>, vector<1x4x8x128xf32>
      %37 = vector.shape_cast %36 : vector<1x4x8x128xf32> to vector<4x8x128xf32>
      %38 = vector.shape_cast %35 : vector<4x8x128xf32> to vector<1x4x8x128xf32>
      tpu.vector_store %arg5[%c0_25, %c0_26, %c0_27, %c0_28], %38 {strides = array<i32>} : memref<1x4x8x128xf32, #tpu.memory_space<vmem>>, vector<1x4x8x128xf32>,
    } else {
    }
    %c0_i32_11 = arith.constant 0 : i32
    %20 = arith.cmpi eq, %arg1, %c0_i32_11 : i32
    %21 = arith.extui %20 : i1 to i32
    %c0_i32_12 = arith.constant 0 : i32
    %22 = arith.cmpi ne, %21, %c0_i32_12 : i32
    scf.if %22 {
      %23 = tpu.iota {dimensions = array<i32: 0>} : vector<8x128xi32>
      %24 = tpu.iota {dimensions = array<i32: 1>} : vector<8x128xi32>
      %c8_i32 = arith.constant 8 : i32
      %25 = arith.muli %arg1, %c8_i32 : i32
      %26 = vector.broadcast %25 : i32 to vector<8x128xi32>
      %27 = arith.addi %26, %23 : vector<8x128xi32>
      %c128_i32 = arith.constant 128 : i32
      %28 = vector.broadcast %c128_i32 : i32 to vector<8x128xi32>
      %29 = arith.muli %27, %28 : vector<8x128xi32>
      %30 = arith.addi %29, %24 : vector<8x128xi32>
      %c256_i32 = arith.constant 256 : i32
      %31 = vector.broadcast %c256_i32 : i32 to vector<8x128xi32>
      %32 = arith.cmpi slt, %30, %31 : vector<8x128xi32>
      %33 = arith.extui %32 : vector<8x128xi1> to vector<8x128xi32>
      %34 = arith.sitofp %33 : vector<8x128xi32> to vector<8x128xf32>
      %35 = vector.shape_cast %34 : vector<8x128xf32> to vector<1x8x128xf32>
      %36 = arith.mulf %16, %6 : vector<4x8x128xf32>
      %37 = arith.mulf %16, %16 : vector<4x8x128xf32>
      %38 = arith.mulf %6, %6 : vector<4x8x128xf32>
      %39 = arith.addf %37, %38 : vector<4x8x128xf32>
      %40 = vector.broadcast %35 : vector<1x8x128xf32> to vector<4x8x128xf32>
      %41 = arith.mulf %39, %40 : vector<4x8x128xf32>
      %c0_13 = arith.constant 0 : index
      %c0_14 = arith.constant 0 : index
      %c0_15 = arith.constant 0 : index
      %c0_16 = arith.constant 0 : index
      %42 = vector.load %arg4[%c0_13, %c0_14, %c0_15, %c0_16] : memref<1x4x8x128xf32, #tpu.memory_space<vmem>>, vector<1x4x8x128xf32>
      %43 = vector.shape_cast %42 : vector<1x4x8x128xf32> to vector<4x8x128xf32>
      %44 = arith.addf %43, %36 : vector<4x8x128xf32>
      %c0_17 = arith.constant 0 : index
      %c0_18 = arith.constant 0 : index
      %c0_19 = arith.constant 0 : index
      %c0_20 = arith.constant 0 : index
      %45 = vector.load %arg4[%c0_17, %c0_18, %c0_19, %c0_20] : memref<1x4x8x128xf32, #tpu.memory_space<vmem>>, vector<1x4x8x128xf32>
      %46 = vector.shape_cast %45 : vector<1x4x8x128xf32> to vector<4x8x128xf32>
      %47 = vector.shape_cast %44 : vector<4x8x128xf32> to vector<1x4x8x128xf32>
      tpu.vector_store %arg4[%c0_17, %c0_18, %c0_19, %c0_20], %47 {strides = array<i32>} : memref<1x4x8x128xf32, #tpu.memory_space<vmem>>, vector<1x4x8x128xf32>,
      %c0_21 = arith.constant 0 : index
      %c0_22 = arith.constant 0 : index
      %c0_23 = arith.constant 0 : index
      %c0_24 = arith.constant 0 : index
      %48 = vector.load %arg5[%c0_21, %c0_22, %c0_23, %c0_24] : memref<1x4x8x128xf32, #tpu.memory_space<vmem>>, vector<1x4x8x128xf32>
      %49 = vector.shape_cast %48 : vector<1x4x8x128xf32> to vector<4x8x128xf32>
      %50 = arith.addf %49, %41 : vector<4x8x128xf32>
      %c0_25 = arith.constant 0 : index
      %c0_26 = arith.constant 0 : index
      %c0_27 = arith.constant 0 : index
      %c0_28 = arith.constant 0 : index
      %51 = vector.load %arg5[%c0_25, %c0_26, %c0_27, %c0_28] : memref<1x4x8x128xf32, #tpu.memory_space<vmem>>, vector<1x4x8x128xf32>
      %52 = vector.shape_cast %51 : vector<1x4x8x128xf32> to vector<4x8x128xf32>
      %53 = vector.shape_cast %50 : vector<4x8x128xf32> to vector<1x4x8x128xf32>
      tpu.vector_store %arg5[%c0_25, %c0_26, %c0_27, %c0_28], %53 {strides = array<i32>} : memref<1x4x8x128xf32, #tpu.memory_space<vmem>>, vector<1x4x8x128xf32>,
    } else {
    }
    return
  }
  func.func @transform_0(%arg0: i32, %arg1: i32) -> (i32, i32, i32, i32) {
    %c0_i32 = arith.constant 0 : i32
    %c0_i32_0 = arith.constant 0 : i32
    %c0_i32_1 = arith.constant 0 : i32
    return %arg0, %c0_i32, %arg1, %c0_i32_0 : i32, i32, i32, i32
  }
  func.func @transform_1(%arg0: i32, %arg1: i32) -> (i32, i32, i32, i32) {
    %c0_i32 = arith.constant 0 : i32
    %c0_i32_0 = arith.constant 0 : i32
    %c0_i32_1 = arith.constant 0 : i32
    return %arg0, %c0_i32, %arg1, %c0_i32_0 : i32, i32, i32, i32
  }
  func.func @transform_2(%arg0: i32, %arg1: i32) -> (i32, i32, i32, i32) {
    %c0_i32 = arith.constant 0 : i32
    %c0_i32_0 = arith.constant 0 : i32
    %c0_i32_1 = arith.constant 0 : i32
    %c0_i32_2 = arith.constant 0 : i32
    return %arg0, %c0_i32, %c0_i32_0, %c0_i32_1 : i32, i32, i32, i32
  }
  func.func @transform_3(%arg0: i32, %arg1: i32) -> (i32, i32, i32, i32) {
    %c0_i32 = arith.constant 0 : i32
    %c0_i32_0 = arith.constant 0 : i32
    %c0_i32_1 = arith.constant 0 : i32
    %c0_i32_2 = arith.constant 0 : i32
    return %arg0, %c0_i32, %c0_i32_0, %c0_i32_1 : i32, i32, i32, i32
  }
}

</mosaic_0001>

<llo_original>
// kernel: tpu_custom_call.1
$region0: #{tpu_custom_call.1}
  #allocation0 [shape = 'u32[]', space=smem, size = 0x4, offset = 0x4, fixed_abs, tag = 'smem constant byte address 0x4 - core index']
  #allocation1 [shape = 'u32[144,128]{1,0:T(1,128)}', space=vmem, size = 0x12000, scoped, tag = 'internal scratch']
  %s0 = inlined_call_operand.hbm [shape: f32[2,4,8,128], index: 0, kind: input, shape index: {}]
  %s1 = inlined_call_operand.hbm [shape: f32[2,4,8,128], index: 1, kind: input, shape index: {}]
  %s2 = inlined_call_operand.hbm [shape: f32[2,4,8,128], index: 2, kind: output, shape index: {0}]
  %s3 = inlined_call_operand.hbm [shape: f32[2,4,8,128], index: 3, kind: output, shape index: {1}]
  %4 = xla_tuple %s2, %s3
  %s5 = sld [smem:[#allocation0]]
  $region69: #{tpu_custom_call.1} parent=0
    _
  %s7 = ssub.s32 1, %s5
  %s8 = scalar_select 0, %s7, %s5
  $region1: #{tpu_custom_call.1} parent=0
    #allocation2 [shape = 'u8[32768]{0}', space=vmem, size = 0x8000, scoped, tag = 'input window, operand 0']
    #allocation3 [shape = 's32[2]{0}', space=sflag, size = 0x8, scoped, tag = 'scoped memory for tpu_custom_call.1']
    #allocation4 [shape = 's32[2]{0}', space=sflag, size = 0x8, scoped, tag = 'scoped memory for tpu_custom_call.1']
    #allocation5 [shape = 'u8[32768]{0}', space=vmem, size = 0x8000, scoped, tag = 'input window, operand 1']
    #allocation6 [shape = 's32[2]{0}', space=sflag, size = 0x8, scoped, tag = 'scoped memory for tpu_custom_call.1']
    #allocation7 [shape = 'u8[32768]{0}', space=vmem, size = 0x8000, scoped, tag = 'output window, operand 0']
    #allocation8 [shape = 'u8[32768]{0}', space=vmem, size = 0x8000, scoped, tag = 'output window, operand 1']
    #allocation9 [shape = 's32[2]{0}', space=sflag, size = 0x8, scoped, tag = 'scoped memory for tpu_custom_call.1']
    %9 = vsyncpa [#allocation3], 0
    %s10 = scalar_lea.sflag [#allocation3], 1
    %11 = vsyncpa %s10, 0
    %12 = vsyncpa [#allocation6], 0
    %s13 = scalar_lea.sflag [#allocation6], 1
    %14 = vsyncpa %s13, 0
    %15 = vsyncpa [#allocation4], 0
    %s16 = scalar_lea.sflag [#allocation4], 1
    %17 = vsyncpa %s16, 0
    %18 = vsyncpa [#allocation9], 0
    %s19 = scalar_lea.sflag [#allocation9], 1
    %20 = vsyncpa %s19, 0
    loop: start=0, step=1, limit=4
    $region2: #{tpu_custom_call.1} parent=1 // loop_pre_header
      _
    $region3: #{tpu_custom_call.1} parent=1 // loop_header
      %s22 = sphi 0, %s26
      %p23 = scmp.ge.s32.totalorder %s22, 4
      %s29 = sphi 0, %s41
      %s30 = sphi 0, %s37
      %s31 = sphi 0, %s29
      %s32 = sphi 0, %s30
      %s33 = sphi 0, %s31
      %s34 = sphi 0, %s32
      %s46 = sphi 0, %s48
      %s49 = sphi 0, %s46
      %s50 = sphi 0, %s49
      %s66 = sphi 0, %s50
      %s74 = sphi 0, %s76
      %s77 = sphi 0, %s74
      %s78 = sphi 0, %s77
      %s94 = sphi 0, %s78
      %s100 = sphi 0, %s102
      %s103 = sphi 0, %s100
      %s104 = sphi 0, %s103
      %s120 = sphi 0, %s104
      %s126 = sphi 0, %s128
      %s129 = sphi 0, %s126
      %s130 = sphi 0, %s129
      %s146 = sphi 0, %s130
    $region4: #{tpu_custom_call.1} parent=1 // loop_header_branch
      %25 = sbr.rel (%p23) target = $region8
    $region5: #{tpu_custom_call.1} parent=1 // loop_body
      %s27 = ssub.s32 %s22, 1
      %s28 = ssub.s32 %s22, 2
      %s35 = sadd.s32 1, %s30
      %p36 = scmp.ge.s32.totalorder %s35, 1
      %s37 = scalar_select %p36, 0, %s35
      %s38 = sadd.s32 1, %s29
      %s39 = scalar_select %p36, %s38, %s29
      %p40 = scmp.ge.s32.totalorder %s39, 2
      %s41 = scalar_select %p40, 0, %s39
      %s42 = ssub.s32 %s29, %s41
      %s43 = ssub.s32 %s30, %s37
      %s44 = sor.u32 %s42, %s43
      %p45 = scmp.eq.s32.totalorder %s44, 0
      %s47 = sadd.s32 %s46, 1
      %s48 = scalar_select %p45, %s46, %s47
      %p51 = pneg %p45
      %p52 = scmp.eq.s32.totalorder %s22, 1
      %p53 = por %p51, %p52
      %p54 = scmp.ne.s32.totalorder %s46, %s49
      %p55 = scmp.eq.s32.totalorder %s22, 0
      %p56 = por %p54, %p55
      %p57 = scmp.ne.s32.totalorder %s46, %s49
      %p58 = scmp.eq.s32.totalorder %s27, 1
      %p59 = por %p57, %p58
      %p60 = scmp.ne.s32.totalorder %s49, %s50
      %p61 = scmp.eq.s32.totalorder %s27, 0
      %p62 = por %p60, %p61
      %p63 = scmp.ne.s32.totalorder %s49, %s50
      %p64 = scmp.eq.s32.totalorder %s28, 1
      %p65 = por %p63, %p64
      %p67 = scmp.ne.s32.totalorder %s50, %s66
      %p68 = scmp.eq.s32.totalorder %s28, 0
      %p69 = por %p67, %p68
      %s70 = ssub.s32 %s29, %s41
      %s71 = ssub.s32 %s30, %s37
      %s72 = sor.u32 %s70, %s71
      %p73 = scmp.eq.s32.totalorder %s72, 0
      %s75 = sadd.s32 %s74, 1
      %s76 = scalar_select %p73, %s74, %s75
      %p79 = pneg %p73
      %p80 = scmp.eq.s32.totalorder %s22, 1
      %p81 = por %p79, %p80
      %p82 = scmp.ne.s32.totalorder %s74, %s77
      %p83 = scmp.eq.s32.totalorder %s22, 0
      %p84 = por %p82, %p83
      %p85 = scmp.ne.s32.totalorder %s74, %s77
      %p86 = scmp.eq.s32.totalorder %s27, 1
      %p87 = por %p85, %p86
      %p88 = scmp.ne.s32.totalorder %s77, %s78
      %p89 = scmp.eq.s32.totalorder %s27, 0
      %p90 = por %p88, %p89
      %p91 = scmp.ne.s32.totalorder %s77, %s78
      %p92 = scmp.eq.s32.totalorder %s28, 1
      %p93 = por %p91, %p92
      %p95 = scmp.ne.s32.totalorder %s78, %s94
      %p96 = scmp.eq.s32.totalorder %s28, 0
      %p97 = por %p95, %p96
      %s98 = ssub.s32 %s29, %s41
      %p99 = scmp.eq.s32.totalorder %s98, 0
      %s101 = sadd.s32 %s100, 1
      %s102 = scalar_select %p99, %s100, %s101
      %p105 = pneg %p99
      %p106 = scmp.eq.s32.totalorder %s22, 1
      %p107 = por %p105, %p106
      %p108 = scmp.ne.s32.totalorder %s100, %s103
      %p109 = scmp.eq.s32.totalorder %s22, 0
      %p110 = por %p108, %p109
      %p111 = scmp.ne.s32.totalorder %s100, %s103
      %p112 = scmp.eq.s32.totalorder %s27, 1
      %p113 = por %p111, %p112
      %p114 = scmp.ne.s32.totalorder %s103, %s104
      %p115 = scmp.eq.s32.totalorder %s27, 0
      %p116 = por %p114, %p115
      %p117 = scmp.ne.s32.totalorder %s103, %s104
      %p118 = scmp.eq.s32.totalorder %s28, 1
      %p119 = por %p117, %p118
      %p121 = scmp.ne.s32.totalorder %s104, %s120
      %p122 = scmp.eq.s32.totalorder %s28, 0
      %p123 = por %p121, %p122
      %s124 = ssub.s32 %s29, %s41
      %p125 = scmp.eq.s32.totalorder %s124, 0
      %s127 = sadd.s32 %s126, 1
      %s128 = scalar_select %p125, %s126, %s127
      %p131 = pneg %p125
      %p132 = scmp.eq.s32.totalorder %s22, 1
      %p133 = por %p131, %p132
      %p134 = scmp.ne.s32.totalorder %s126, %s129
      %p135 = scmp.eq.s32.totalorder %s22, 0
      %p136 = por %p134, %p135
      %p137 = scmp.ne.s32.totalorder %s126, %s129
      %p138 = scmp.eq.s32.totalorder %s27, 1
      %p139 = por %p137, %p138
      %p140 = scmp.ne.s32.totalorder %s129, %s130
      %p141 = scmp.eq.s32.totalorder %s27, 0
      %p142 = por %p140, %p141
      %p143 = scmp.ne.s32.totalorder %s129, %s130
      %p144 = scmp.eq.s32.totalorder %s28, 1
      %p145 = por %p143, %p144
      %p147 = scmp.ne.s32.totalorder %s130, %s146
      %p148 = scmp.eq.s32.totalorder %s28, 0
      %p149 = por %p147, %p148
      %p150 = scmp.le.s32.totalorder 1, %s22
      %p151 = scmp.lt.s32.totalorder %s22, 3
      %p152 = pnand %p150, %p151
      %p153 = pneg %p152
      // Predicated region
      $region9: #{tpu_custom_call.1} parent=5 // pred_check
        _
      $region10: #{tpu_custom_call.1} parent=5 // pred_check_branch
        %155 = sbr.rel (%p152) target = $region12
      $region11: #{tpu_custom_call.1} parent=5 // pred_region
        %s156 = ssub.s32 %s22, 1
      $region12: #{tpu_custom_call.1} parent=5 // pred_fallthru
        _
      %p157 = scmp.lt.s32.totalorder %s22, 2
      // Predicated region
      $region13: #{tpu_custom_call.1} parent=5 // pred_check
        %p158 = pneg %p157
      $region14: #{tpu_custom_call.1} parent=5 // pred_check_branch
        %160 = sbr.rel (%p158) target = $region16
      $region15: #{tpu_custom_call.1} parent=5 // pred_region
        // Predicated region
        $region17: #{tpu_custom_call.1} parent=15 // pred_check
          %p161 = pneg %p56
        $region18: #{tpu_custom_call.1} parent=15 // pred_check_branch
          %163 = sbr.rel (%p161) target = $region20
        $region19: #{tpu_custom_call.1} parent=15 // pred_region
          %s164 = sand.u32 %s46, 1
          %s165 = scalar_lea.sflag [#allocation3], %s164
          %s166 = sand.u32 %s46, 1
          %s167 = smul.addr %s166, 32
          %s168 = scalar_lea.vmem [#allocation2], %s167
          %s170 = ssub.s32 512, 512
          %171 = vsyncadd %s165, %s170
          %s172 = smul.addr %s29, 4
          %s173 = sadd.s32 %s30, %s172
          %s174 = smul.addr %s173, 128
          %s175 = scalar_lea.hbm %s0, %s174
          %s176 = sshll.u32 %s168, 4
          %s177 = int_to_ptr.vmem [resolvable:$true] %s176
          %182 = dma.hbm_to_vmem [thread:$0]  %s175, 512, %s177, %s165, 128, 128, 8
        $region20: #{tpu_custom_call.1} parent=15 // pred_fallthru
          _
        // Predicated region
        $region21: #{tpu_custom_call.1} parent=15 // pred_check
          %p183 = pneg %p84
        $region22: #{tpu_custom_call.1} parent=15 // pred_check_branch
          %185 = sbr.rel (%p183) target = $region24
        $region23: #{tpu_custom_call.1} parent=15 // pred_region
          %s186 = sand.u32 %s74, 1
          %s187 = scalar_lea.sflag [#allocation6], %s186
          %s188 = sand.u32 %s74, 1
          %s189 = smul.addr %s188, 32
          %s190 = scalar_lea.vmem [#allocation5], %s189
          %s192 = ssub.s32 512, 512
          %193 = vsyncadd %s187, %s192
          %s194 = smul.addr %s29, 4
          %s195 = sadd.s32 %s30, %s194
          %s196 = smul.addr %s195, 128
          %s197 = scalar_lea.hbm %s1, %s196
          %s198 = sshll.u32 %s190, 4
          %s199 = int_to_ptr.vmem [resolvable:$true] %s198
          %204 = dma.hbm_to_vmem [thread:$0]  %s197, 512, %s199, %s187, 128, 128, 8
        $region24: #{tpu_custom_call.1} parent=15 // pred_fallthru
          _
      $region16: #{tpu_custom_call.1} parent=5 // pred_fallthru
        _
      %p205 = scmp.le.s32.totalorder 1, %s22
      %p206 = scmp.lt.s32.totalorder %s22, 3
      %p207 = pnand %p205, %p206
      %p208 = pneg %p207
      // Predicated region
      $region25: #{tpu_custom_call.1} parent=5 // pred_check
        _
      $region26: #{tpu_custom_call.1} parent=5 // pred_check_branch
        %210 = sbr.rel (%p207) target = $region28
      $region27: #{tpu_custom_call.1} parent=5 // pred_region
        %s211 = ssub.s32 %s22, 1
        %s212 = sand.u32 %s49, 1
        %s213 = scalar_lea.sflag [#allocation3], %s212
        %s214 = sand.u32 %s49, 1
        %s215 = smul.addr %s214, 32
        %s216 = scalar_lea.vmem [#allocation2], %s215
        // Predicated region
        $region29: #{tpu_custom_call.1} parent=27 // pred_check
          %p217 = pneg %p62
        $region30: #{tpu_custom_call.1} parent=27 // pred_check_branch
          %219 = sbr.rel (%p217) target = $region32
        $region31: #{tpu_custom_call.1} parent=27 // pred_region
          %220 = dma.done %s213, 512
        $region32: #{tpu_custom_call.1} parent=27 // pred_fallthru
          _
        %s221 = sand.u32 %s77, 1
        %s222 = scalar_lea.sflag [#allocation6], %s221
        %s223 = sand.u32 %s77, 1
        %s224 = smul.addr %s223, 32
        %s225 = scalar_lea.vmem [#allocation5], %s224
        // Predicated region
        $region33: #{tpu_custom_call.1} parent=27 // pred_check
          %p226 = pneg %p90
        $region34: #{tpu_custom_call.1} parent=27 // pred_check_branch
          %228 = sbr.rel (%p226) target = $region36
        $region35: #{tpu_custom_call.1} parent=27 // pred_region
          %229 = dma.done %s222, 512
        $region36: #{tpu_custom_call.1} parent=27 // pred_fallthru
          _
        %s230 = sand.u32 %s49, 1
        %s231 = scalar_lea.sflag [#allocation3], %s230
        %s232 = sand.u32 %s49, 1
        %s233 = smul.addr %s232, 32
        %s234 = scalar_lea.vmem [#allocation2], %s233
        %p235 = pneg %p62
        %p236 = pneg %p59
        %s237 = sand.u32 %s77, 1
        %s238 = scalar_lea.sflag [#allocation6], %s237
        %s239 = sand.u32 %s77, 1
        %s240 = smul.addr %s239, 32
        %s241 = scalar_lea.vmem [#allocation5], %s240
        %p242 = pneg %p90
        %p243 = pneg %p87
        %p244 = pneg %p116
        %p245 = pneg %p113
        %s246 = sand.u32 %s103, 1
        %s247 = scalar_lea.sflag [#allocation4], %s246
        %s248 = sand.u32 %s103, 1
        %s249 = smul.addr %s248, 32
        %s250 = scalar_lea.vmem [#allocation7], %s249
        %p251 = pneg %p142
        %p252 = pneg %p139
        %s253 = sand.u32 %s129, 1
        %s254 = scalar_lea.sflag [#allocation9], %s253
        %s255 = sand.u32 %s129, 1
        %s256 = smul.addr %s255, 32
        %s257 = scalar_lea.vmem [#allocation8], %s256
        %p258 = scmp.eq.s32.totalorder %s32, 0
        // Predicated region
        $region37: #{tpu_custom_call.1} parent=27 // pred_check
          %p259 = pneg %p258
        $region38: #{tpu_custom_call.1} parent=27 // pred_check_branch
          %261 = sbr.rel (%p259) target = $region40
        $region39: #{tpu_custom_call.1} parent=27 // pred_region
          %262 = vst [vmem:[%s250] sm:$0xff] 0.0
          %263 = vst [vmem:[%s250 + $0x8] sm:$0xff] 0.0
          %264 = vst [vmem:[%s250 + $0x10] sm:$0xff] 0.0
          %265 = vst [vmem:[%s250 + $0x18] sm:$0xff] 0.0
          %266 = vst [vmem:[%s257] sm:$0xff] 0.0
          %267 = vst [vmem:[%s257 + $0x8] sm:$0xff] 0.0
          %268 = vst [vmem:[%s257 + $0x10] sm:$0xff] 0.0
          %269 = vst [vmem:[%s257 + $0x18] sm:$0xff] 0.0
        $region40: #{tpu_custom_call.1} parent=27 // pred_fallthru
          _
        %v270 = vld [vmem:[%s216] sm:$0xff]
        %v271 = vld [vmem:[%s216 + $0x8] sm:$0xff]
        %v272 = vld [vmem:[%s216 + $0x10] sm:$0xff]
        %v273 = vld [vmem:[%s216 + $0x18] sm:$0xff]
        %v274 = vld [vmem:[%s225] sm:$0xff]
        %v275 = vld [vmem:[%s225 + $0x8] sm:$0xff]
        %v276 = vld [vmem:[%s225 + $0x10] sm:$0xff]
        %v277 = vld [vmem:[%s225 + $0x18] sm:$0xff]
        %v278 = vmax.f32 %v270, %v271
        %v279 = vmax.f32 %v272, %v273
        %v280 = vmax.f32 %v278, %v279
        %v281 = vsub.f32 %v270, %v280
        %v282 = vsub.f32 %v271, %v280
        %v283 = vsub.f32 %v272, %v280
        %v284 = vsub.f32 %v273, %v280
        %v285 = vmul.f32 %v281, 1.442695
        %v286 = vpow.pop %v285
        %v287 = vmul.f32 %v282, 1.442695
        %v288 = vpow.pop %v287
        %v289 = vmul.f32 %v283, 1.442695
        %v290 = vpow.pop %v289
        %v291 = vmul.f32 %v284, 1.442695
        %v292 = vpow.pop %v291
        %v293 = vadd.f32 %v286, %v288
        %v294 = vadd.f32 %v293, %v290
        %v295 = vadd.f32 %v294, %v292
        %v296 = vrcp.pop %v295
        %v297 = vmul.f32 %v286, %v296
        %v298 = vmul.f32 %v288, %v296
        %v299 = vmul.f32 %v290, %v296
        %v300 = vmul.f32 %v292, %v296
        %p301 = scmp.ne.s32.totalorder %s32, 0
        // Predicated region
        $region41: #{tpu_custom_call.1} parent=27 // pred_check
          %p302 = pneg %p301
        $region42: #{tpu_custom_call.1} parent=27 // pred_check_branch
          %304 = sbr.rel (%p302) target = $region44
        $region43: #{tpu_custom_call.1} parent=27 // pred_region
          %v305 = vmul.f32 %v297, %v274
          %v306 = vmul.f32 %v298, %v275
          %v307 = vmul.f32 %v299, %v276
          %v308 = vmul.f32 %v300, %v277
          %v309 = vmul.f32 %v297, %v297
          %v310 = vmul.f32 %v298, %v298
          %v311 = vmul.f32 %v299, %v299
          %v312 = vmul.f32 %v300, %v300
          %v313 = vmul.f32 %v274, %v274
          %v314 = vmul.f32 %v275, %v275
          %v315 = vmul.f32 %v276, %v276
          %v316 = vmul.f32 %v277, %v277
          %v317 = vadd.f32 %v309, %v313
          %v318 = vadd.f32 %v310, %v314
          %v319 = vadd.f32 %v311, %v315
          %v320 = vadd.f32 %v312, %v316
          %v321 = vld [vmem:[%s250] sm:$0xff]
          %v322 = vld [vmem:[%s250 + $0x8] sm:$0xff]
          %v323 = vld [vmem:[%s250 + $0x10] sm:$0xff]
          %v324 = vld [vmem:[%s250 + $0x18] sm:$0xff]
          %v325 = vadd.f32 %v321, %v305
          %v326 = vadd.f32 %v322, %v306
          %v327 = vadd.f32 %v323, %v307
          %v328 = vadd.f32 %v324, %v308
          %329 = vst [vmem:[%s250] sm:$0xff] %v325
          %330 = vst [vmem:[%s250 + $0x8] sm:$0xff] %v326
          %331 = vst [vmem:[%s250 + $0x10] sm:$0xff] %v327
          %332 = vst [vmem:[%s250 + $0x18] sm:$0xff] %v328
          %v333 = vld [vmem:[%s257] sm:$0xff]
          %v334 = vld [vmem:[%s257 + $0x8] sm:$0xff]
          %v335 = vld [vmem:[%s257 + $0x10] sm:$0xff]
          %v336 = vld [vmem:[%s257 + $0x18] sm:$0xff]
          %v337 = vadd.f32 %v333, %v317
          %v338 = vadd.f32 %v334, %v318
          %v339 = vadd.f32 %v335, %v319
          %v340 = vadd.f32 %v336, %v320
          %341 = vst [vmem:[%s257] sm:$0xff] %v337
          %342 = vst [vmem:[%s257 + $0x8] sm:$0xff] %v338
          %343 = vst [vmem:[%s257 + $0x10] sm:$0xff] %v339
          %344 = vst [vmem:[%s257 + $0x18] sm:$0xff] %v340
        $region44: #{tpu_custom_call.1} parent=27 // pred_fallthru
          _
        // Predicated region
        $region45: #{tpu_custom_call.1} parent=27 // pred_check
          %p345 = pneg %p258
        $region46: #{tpu_custom_call.1} parent=27 // pred_check_branch
          %347 = sbr.rel (%p345) target = $region48
        $region47: #{tpu_custom_call.1} parent=27 // pred_region
          %v348 = vlaneseq
          %v349 = vshrl.u32 %v348, 7
          %v350 = vlaneseq
          %v351 = vand.u32 %v350, 127
          %s352 = smul.u32 %s32, 8
          %v353 = vstv %s352
          %v354 = vadd.s32 %v353, %v349
          %v355 = vmul.u32 %v354, 128
          %v356 = vadd.s32 %v355, %v351
          %vm357 = vcmp.lt.s32.totalorder %v356, 256
          %v358 = vsel %vm357, 1, 0
          %v359 = vcvt.s32.f32 %v358
          %v360 = vmul.f32 %v297, %v274
          %v361 = vmul.f32 %v298, %v275
          %v362 = vmul.f32 %v299, %v276
          %v363 = vmul.f32 %v300, %v277
          %v364 = vmul.f32 %v297, %v297
          %v365 = vmul.f32 %v298, %v298
          %v366 = vmul.f32 %v299, %v299
          %v367 = vmul.f32 %v300, %v300
          %v368 = vmul.f32 %v274, %v274
          %v369 = vmul.f32 %v275, %v275
          %v370 = vmul.f32 %v276, %v276
          %v371 = vmul.f32 %v277, %v277
          %v372 = vadd.f32 %v364, %v368
          %v373 = vadd.f32 %v365, %v369
          %v374 = vadd.f32 %v366, %v370
          %v375 = vadd.f32 %v367, %v371
          %v376 = vmul.f32 %v372, %v359
          %v377 = vmul.f32 %v373, %v359
          %v378 = vmul.f32 %v374, %v359
          %v379 = vmul.f32 %v375, %v359
          %v380 = vld [vmem:[%s250] sm:$0xff]
          %v381 = vld [vmem:[%s250 + $0x8] sm:$0xff]
          %v382 = vld [vmem:[%s250 + $0x10] sm:$0xff]
          %v383 = vld [vmem:[%s250 + $0x18] sm:$0xff]
          %v384 = vadd.f32 %v380, %v360
          %v385 = vadd.f32 %v381, %v361
          %v386 = vadd.f32 %v382, %v362
          %v387 = vadd.f32 %v383, %v363
          %388 = vst [vmem:[%s250] sm:$0xff] %v384
          %389 = vst [vmem:[%s250 + $0x8] sm:$0xff] %v385
          %390 = vst [vmem:[%s250 + $0x10] sm:$0xff] %v386
          %391 = vst [vmem:[%s250 + $0x18] sm:$0xff] %v387
          %v392 = vld [vmem:[%s257] sm:$0xff]
          %v393 = vld [vmem:[%s257 + $0x8] sm:$0xff]
          %v394 = vld [vmem:[%s257 + $0x10] sm:$0xff]
          %v395 = vld [vmem:[%s257 + $0x18] sm:$0xff]
          %v396 = vadd.f32 %v392, %v376
          %v397 = vadd.f32 %v393, %v377
          %v398 = vadd.f32 %v394, %v378
          %v399 = vadd.f32 %v395, %v379
          %400 = vst [vmem:[%s257] sm:$0xff] %v396
          %401 = vst [vmem:[%s257 + $0x8] sm:$0xff] %v397
          %402 = vst [vmem:[%s257 + $0x10] sm:$0xff] %v398
          %403 = vst [vmem:[%s257 + $0x18] sm:$0xff] %v399
        $region48: #{tpu_custom_call.1} parent=27 // pred_fallthru
          _
        %s404 = sand.u32 %s103, 1
        %s405 = scalar_lea.sflag [#allocation4], %s404
        %s406 = sand.u32 %s103, 1
        %s407 = smul.addr %s406, 32
        %s408 = scalar_lea.vmem [#allocation7], %s407
        %s409 = sand.u32 %s129, 1
        %s410 = scalar_lea.sflag [#allocation9], %s409
        %s411 = sand.u32 %s129, 1
        %s412 = smul.addr %s411, 32
        %s413 = scalar_lea.vmem [#allocation8], %s412
        // Predicated region
        $region49: #{tpu_custom_call.1} parent=27 // pred_check
          %p414 = pneg %p113
        $region50: #{tpu_custom_call.1} parent=27 // pred_check_branch
          %416 = sbr.rel (%p414) target = $region52
        $region51: #{tpu_custom_call.1} parent=27 // pred_region
          %s418 = ssub.s32 512, 512
          %419 = vsyncadd %s405, %s418
          %s420 = smul.addr %s31, 4
          %s421 = smul.addr %s420, 128
          %s422 = scalar_lea.hbm %s2, %s421
          %s423 = sshll.u32 %s408, 4
          %s424 = int_to_ptr.vmem [resolvable:$true] %s423
          %429 = dma.vmem_to_hbm [thread:$0]  %s424, 512, %s422, %s405, 128, 128, 8
        $region52: #{tpu_custom_call.1} parent=27 // pred_fallthru
          _
        // Predicated region
        $region53: #{tpu_custom_call.1} parent=27 // pred_check
          %p430 = pneg %p139
        $region54: #{tpu_custom_call.1} parent=27 // pred_check_branch
          %432 = sbr.rel (%p430) target = $region56
        $region55: #{tpu_custom_call.1} parent=27 // pred_region
          %s434 = ssub.s32 512, 512
          %435 = vsyncadd %s410, %s434
          %s436 = smul.addr %s31, 4
          %s437 = smul.addr %s436, 128
          %s438 = scalar_lea.hbm %s3, %s437
          %s439 = sshll.u32 %s413, 4
          %s440 = int_to_ptr.vmem [resolvable:$true] %s439
          %445 = dma.vmem_to_hbm [thread:$0]  %s440, 512, %s438, %s410, 128, 128, 8
        $region56: #{tpu_custom_call.1} parent=27 // pred_fallthru
          _
      $region28: #{tpu_custom_call.1} parent=5 // pred_fallthru
        _
      %p446 = scmp.le.s32.totalorder 2, %s22
      // Predicated region
      $region57: #{tpu_custom_call.1} parent=5 // pred_check
        %p447 = pneg %p446
      $region58: #{tpu_custom_call.1} parent=5 // pred_check_branch
        %449 = sbr.rel (%p447) target = $region60
      $region59: #{tpu_custom_call.1} parent=5 // pred_region
        %s450 = ssub.s32 %s22, 2
        // Predicated region
        $region61: #{tpu_custom_call.1} parent=59 // pred_check
          %p451 = pneg %p119
        $region62: #{tpu_custom_call.1} parent=59 // pred_check_branch
          %453 = sbr.rel (%p451) target = $region64
        $region63: #{tpu_custom_call.1} parent=59 // pred_region
          %s454 = sand.u32 %s104, 1
          %s455 = scalar_lea.sflag [#allocation4], %s454
          %s456 = sand.u32 %s104, 1
          %s457 = smul.addr %s456, 32
          %s458 = scalar_lea.vmem [#allocation7], %s457
          %459 = dma.done %s455, 512
        $region64: #{tpu_custom_call.1} parent=59 // pred_fallthru
          _
        // Predicated region
        $region65: #{tpu_custom_call.1} parent=59 // pred_check
          %p460 = pneg %p145
        $region66: #{tpu_custom_call.1} parent=59 // pred_check_branch
          %462 = sbr.rel (%p460) target = $region68
        $region67: #{tpu_custom_call.1} parent=59 // pred_region
          %s463 = sand.u32 %s130, 1
          %s464 = scalar_lea.sflag [#allocation9], %s463
          %s465 = sand.u32 %s130, 1
          %s466 = smul.addr %s465, 32
          %s467 = scalar_lea.vmem [#allocation8], %s466
          %468 = dma.done %s464, 512
        $region68: #{tpu_custom_call.1} parent=59 // pred_fallthru
          _
      $region60: #{tpu_custom_call.1} parent=5 // pred_fallthru
        _
    $region6: #{tpu_custom_call.1} parent=1 // loop_footer
      %s26 = sadd.s32 1, %s22
    $region7: #{tpu_custom_call.1} parent=1 // loop_footer_branch
      %21 = sbr.rel target = $region3
    $region8: #{tpu_custom_call.1} parent=1 // loop_exit
      _
    %469 = vsyncpa [#allocation3], 1
    %s470 = scalar_lea.sflag [#allocation3], 1
    %471 = vsyncpa %s470, 1
    %472 = vsyncpa [#allocation6], 1
    %s473 = scalar_lea.sflag [#allocation6], 1
    %474 = vsyncpa %s473, 1
    %475 = vsyncpa [#allocation4], 1
    %s476 = scalar_lea.sflag [#allocation4], 1
    %477 = vsyncpa %s476, 1
    %478 = vsyncpa [#allocation9], 1
    %s479 = scalar_lea.sflag [#allocation9], 1
    %480 = vsyncpa %s479, 1

</llo_original>
